<compile_context>
chip_gen: v7x
topology: tpu7x:2x2x1
jax: 0.10.0
libtpu: 0.0.40
codegen_flags: <defaults>
</compile_context>

<pallas_src>
import functools

import jax
import jax.numpy as jnp
from jax import lax
from jax.experimental import pallas as pl
from jax.experimental.pallas import tpu as pltpu

BN_EPS = 1e-5


def _benchmark_kernel(x_ref, w_ref, p_ref, o_ref, *, hw_chunk):
    # x_ref: (TN, HW, Cin) input dtype (f32/bf16)   w_ref: (Cin, TC) bf16
    # p_ref: (2, TC) f32 [scale; shift]             o_ref: (TN, TC) f32
    tn, hw, _ = x_ref.shape
    tc = o_ref.shape[1]
    n_chunks = hw // hw_chunk            # static; wrapper guarantees hw_chunk | HW

    w = w_ref[...]                       # (Cin, TC) bf16, loaded once per grid step
    scale = p_ref[0:1, :]                # (1, TC)  gamma*rsqrt(var+eps)/HW
    shift = p_ref[1:2, :]                # (1, TC)  beta - mean*gamma*rsqrt(var+eps)

    def chunk_sum(x_chunk):
        # 1x1-conv stand-in (bias-free) + ReLU + spatial partial sum.  The
        # (hw_chunk, TC) matmul partial is consumed immediately — it never becomes a
        # big VMEM slab that has to be stored and reloaded.
        y = jnp.dot(x_chunk.astype(jnp.bfloat16), w,
                    preferred_element_type=jnp.float32)              # (hw_chunk, TC) f32
        return jnp.sum(jnp.maximum(y, 0.0), axis=0, keepdims=True)   # (1, TC) f32

    def per_image(i, carry):
        if n_chunks == 1:
            pooled = chunk_sum(x_ref[i])                             # (HW, Cin)
        else:
            def hw_body(c, acc):
                start = pl.multiple_of(c * hw_chunk, hw_chunk)
                return acc + chunk_sum(x_ref[i, pl.ds(start, hw_chunk), :])
            pooled = lax.fori_loop(0, n_chunks, hw_body,
                                   jnp.zeros((1, tc), jnp.float32), unroll=True)
        # AdaptiveAvgPool2d(1) (the 1/HW is folded into `scale`) + BatchNorm1d eval.
        o_ref[pl.ds(i, 1), :] = pooled * scale + shift
        return carry

    lax.fori_loop(0, tn, per_image, 0, unroll=True)


def _pick_tc(cp):
    # Widest lane tile (<= 512) dividing Cp: >= 256 fills the v6e/v7x 256x256 MXU;
    # <= 512 bounds the weight tile for v5e's 16 MiB scoped VMEM / v7x's 64 MiB VMEM.
    for t in (512, 384, 256, 128):
        if cp % t == 0:
            return t
    return 128


def _pick_hw_chunk(hw, max_rows=512):
    # Largest divisor of HW that is <= max_rows so each matmul partial stays small.
    if hw <= max_rows:
        return hw
    best = 1
    for d in range(1, max_rows + 1):
        if hw % d == 0:
            best = d
    return best


def _pick_tn(n, hw, cin, itemsize, tn_max, x_tile_budget=4 * 2**20):
    # Images per grid step: bounded by a VMEM byte budget for the (TN, HW, Cin) tile,
    # rounded to a sublane multiple (output block's second-minor dim), preferring
    # >= 2 batch tiles so both v7x TensorCores get work on the "parallel" batch axis.
    cap = max(1, min(tn_max, x_tile_budget // max(hw * cin * itemsize, 1)))
    if n < 8:
        return n                          # block dim == full array dim (sublane rule)
    n_tiles = max(2, pl.cdiv(n, min(cap, n)))
    tn = pl.cdiv(pl.cdiv(n, n_tiles), 8) * 8
    return min(tn, n)


def benchmark_forward_nhwc(x_nhwc, params, *, tn_max=32):
    """x_nhwc: (N, H, W, Cin) channels-last activations.  Returns f: (N, FEATURE_DIM) f32.

    The kernel reads the activations as-is (no wrapper cast/pad pass) and casts to
    bf16 in-kernel right before the MXU dot; feed bf16 from the producer when possible.
    """
    w, gamma, beta, run_mean, run_var = params
    N, H, W, Cin = x_nhwc.shape
    HW = H * W
    Cout = w.shape[1]

    Cp = pl.cdiv(Cout, 128) * 128        # lane-dense padded feature width
    TC = _pick_tc(Cp)
    n_c = Cp // TC

    # Fold BN eval affine and the 1/HW pooling factor into two vectors (wrapper side,
    # NOT into the conv weight: gamma can be negative and ReLU doesn't commute).
    inv_std = lax.rsqrt(run_var.astype(jnp.float32) + BN_EPS)
    scale = gamma * inv_std / HW
    shift = beta - run_mean * gamma * inv_std
    pvec = jnp.stack([scale, shift]).astype(jnp.float32)         # (2, Cout)
    if Cp != Cout:
        pvec = jnp.pad(pvec, ((0, 0), (0, Cp - Cout)))
        w = jnp.pad(w, ((0, 0), (0, Cp - Cout)))
    w_bf16 = w.astype(jnp.bfloat16)

    # (N, H, W, Cin) -> (N, HW, Cin) is a metadata-only reshape (row-major); the
    # activations keep their dtype and are NOT batch-padded (partial last batch block
    # is handled by Pallas; garbage rows only reach output rows that don't exist).
    x = x_nhwc.reshape(N, HW, Cin)
    itemsize = jnp.dtype(x.dtype).itemsize

    TN = _pick_tn(N, HW, Cin, itemsize, tn_max)
    n_batch = pl.cdiv(N, TN)
    hw_chunk = _pick_hw_chunk(HW)

    # Deliberate VMEM budget: double-buffered tiles + one in-flight matmul partial.
    w_tile_bytes = Cin * TC * 2
    est = (2 * (TN * HW * Cin * itemsize + w_tile_bytes + 2 * TC * 4 + TN * TC * 4)
           + hw_chunk * TC * 4 + hw_chunk * Cin * 2)
    vmem_limit = int(min(48 * 2**20, 2 * est)) if 2 * est > 16 * 2**20 else None

    # Grid-invariant weight block (n_c == 1): double-buffering it is pure waste, so
    # drop to a single buffer once it is big enough to matter (v5e/v7x VMEM budgets).
    w_kwargs = {}
    if n_c == 1 and w_tile_bytes > (1 << 20):
        w_kwargs["pipeline_mode"] = pl.Buffered(1)
    w_spec = pl.BlockSpec((Cin, TC), lambda n, c: (0, c), **w_kwargs)

    kernel = functools.partial(_benchmark_kernel, hw_chunk=hw_chunk)

    out = pl.pallas_call(
        kernel,
        out_shape=jax.ShapeDtypeStruct((N, Cp), jnp.float32),
        grid_spec=pltpu.PrefetchScalarGridSpec(
            num_scalar_prefetch=0,
            # Batch axis outer, Cp axis inner: the (TN, HW, Cin) activation block is
            # revisited (not re-DMA'd) across the inner c sweep; only the small
            # (Cin, TC) weight tile is re-fetched per c step.
            grid=(n_batch, n_c),
            in_specs=[
                pl.BlockSpec((TN, HW, Cin), lambda n, c: (n, 0, 0)),   # activations
                w_spec,                                                # conv weight (bf16)
                pl.BlockSpec((2, TC), lambda n, c: (0, c)),            # BN scale/shift
            ],
            out_specs=pl.BlockSpec((TN, TC), lambda n, c: (n, c)),
        ),
        compiler_params=pltpu.CompilerParams(
            dimension_semantics=("parallel", "parallel"),
            vmem_limit_bytes=vmem_limit),
    )(x, w_bf16, pvec)

    return out[:, :Cout] if Cp != Cout else out


def benchmark_forward(x_nchw, params, **kw):
    """PyTorch-contract entry point: x_nchw (N, Cin, H, W)."""
    # TODO(synk): in a real JAX pipeline feed channels-last (ideally bf16) data
    # directly to benchmark_forward_nhwc and skip this one-time HBM relayout.
    return benchmark_forward_nhwc(jnp.transpose(x_nchw, (0, 2, 3, 1)), params, **kw)


def _reference_forward(x_nchw, params):
    """Pure-JAX f32 reference for the correctness check."""
    w, gamma, beta, run_mean, run_var = params
    N, Cin, H, W = x_nchw.shape
    x = jnp.transpose(x_nchw, (0, 2, 3, 1)).reshape(N, H * W, Cin)
    y = jnp.maximum(jnp.einsum('nsc,co->nso', x, w), 0.0)        # bias-free conv + ReLU
    pooled = jnp.mean(y, axis=1)                                 # AdaptiveAvgPool2d(1)
    return (pooled - run_mean) / jnp.sqrt(run_var + BN_EPS) * gamma + beta


def make_params(key, cin, feature_dim):
    """Deterministic parameter init mirroring the module's __init__."""
    k_w, k_g, k_m, k_v = jax.random.split(key, 4)
    # Stand-in backbone 1x1 conv: Cin -> FEATURE_DIM (bias-free, as in ResNet convs).
    w = jax.random.normal(k_w, (cin, feature_dim), jnp.float32) * 0.1
    # BatchNorm1d: init.normal_(weight, 1.0, 0.02); init.constant_(bias, 0.0)
    gamma = 1.0 + 0.02 * jax.random.normal(k_g, (feature_dim,), jnp.float32)
    beta = jnp.zeros((feature_dim,), jnp.float32)
    # Non-trivial running stats so the folded scale/shift path is actually exercised.
    run_mean = 0.1 * jax.random.normal(k_m, (feature_dim,), jnp.float32)
    run_var = 1.0 + 0.5 * jax.random.uniform(k_v, (feature_dim,), jnp.float32)
    return (w, gamma, beta, run_mean, run_var)


if __name__ == "__main__":
    key = jax.random.PRNGKey(0)
    k_x, k_p = jax.random.split(key)

    N, Cin, H, W = 2, 4, 16, 16       # small NCHW image batch
    FEATURE_DIM = 32                  # small stand-in for ResNet's 2048

    x = jax.random.normal(k_x, (N, Cin, H, W), jnp.float32)
    params = make_params(k_p, Cin, FEATURE_DIM)

    f = benchmark_forward(x, params)
    jax.block_until_ready(f)

    f_ref = _reference_forward(x, params)
    assert f.shape == (N, FEATURE_DIM)
    # bf16 MXU inputs -> loosened tolerance vs. the f32 reference.
    assert jnp.allclose(f, f_ref, atol=2e-2, rtol=2e-2), "mismatch vs reference"

    print("KERNEL_OK")
</pallas_src>

<mosaic_0001>
module attributes {stable_mosaic.version = 11 : i64} {
  func.func @_benchmark_kernel(%arg0: i32, %arg1: i32, %arg2: memref<2x256x4xf32, #tpu.memory_space<vmem>>, %arg3: memref<4x128xbf16, #tpu.memory_space<vmem>>, %arg4: memref<2x128xf32, #tpu.memory_space<vmem>>, %arg5: memref<2x128xf32, #tpu.memory_space<vmem>>) attributes {dimension_semantics = [#tpu.dimension_semantics<parallel>, #tpu.dimension_semantics<parallel>], iteration_bounds = array<i64: 1, 1>, scalar_prefetch = 0 : i64, scratch_operands = 0 : i64, tpu.core_type = #tpu.core_type<tc>, window_params = [{transform_indices = @transform_0, window_bounds = array<i64: 2, 256, 4>}, {transform_indices = @transform_1, window_bounds = array<i64: 4, 128>}, {transform_indices = @transform_2, window_bounds = array<i64: 2, 128>}, {transform_indices = @transform_3, window_bounds = array<i64: 2, 128>}]} {
    %c0 = arith.constant 0 : index
    %c0_0 = arith.constant 0 : index
    %0 = vector.load %arg3[%c0, %c0_0] : memref<4x128xbf16, #tpu.memory_space<vmem>>, vector<4x128xbf16>
    %c0_1 = arith.constant 0 : index
    %c0_2 = arith.constant 0 : index
    %1 = vector.load %arg4[%c0_1, %c0_2] : memref<2x128xf32, #tpu.memory_space<vmem>>, vector<1x128xf32>
    %c1 = arith.constant 1 : index
    %c0_3 = arith.constant 0 : index
    %2 = vector.load %arg4[%c1, %c0_3] : memref<2x128xf32, #tpu.memory_space<vmem>>, vector<1x128xf32>
    %c0_i32 = arith.constant 0 : i32
    %3 = arith.index_cast %c0_i32 : i32 to index
    %c0_4 = arith.constant 0 : index
    %c0_5 = arith.constant 0 : index
    %4 = vector.load %arg2[%3, %c0_4, %c0_5] : memref<2x256x4xf32, #tpu.memory_space<vmem>>, vector<1x256x4xf32>
    %5 = vector.shape_cast %4 : vector<1x256x4xf32> to vector<256x4xf32>
    %6 = arith.truncf %5 : vector<256x4xf32> to vector<256x4xbf16>
    %cst = arith.constant dense<0.000000e+00> : vector<256x128xf32>
    %7 = tpu.matmul %6, %0, %cst {dimension_numbers = #tpu.dot_dimension_numbers<[1], [0], [0], [1], [0, 0, 1, 1], [], []>} : vector<256x4xbf16>, vector<4x128xbf16>, vector<256x128xf32> -> vector<256x128xf32>
    %cst_6 = arith.constant 0.000000e+00 : f32
    %8 = vector.broadcast %cst_6 : f32 to vector<256x128xf32>
    %9 = arith.maximumf %7, %8 : vector<256x128xf32>
    %cst_7 = arith.constant dense<0.000000e+00> : vector<128xf32>
    %10 = vector.multi_reduction <add>, %9, %cst_7 [0] : vector<256x128xf32> to vector<128xf32>
    %11 = vector.shape_cast %10 : vector<128xf32> to vector<1x128xf32>
    %12 = arith.mulf %11, %1 : vector<1x128xf32>
    %13 = arith.addf %12, %2 : vector<1x128xf32>
    %14 = arith.index_cast %c0_i32 : i32 to index
    %c0_8 = arith.constant 0 : index
    %15 = vector.load %arg5[%14, %c0_8] : memref<2x128xf32, #tpu.memory_space<vmem>>, vector<1x128xf32>
    tpu.vector_store %arg5[%14, %c0_8], %13 {strides = array<i32>} : memref<2x128xf32, #tpu.memory_space<vmem>>, vector<1x128xf32>,
    %c1_i32 = arith.constant 1 : i32
    %16 = arith.index_cast %c1_i32 : i32 to index
    %c0_9 = arith.constant 0 : index
    %c0_10 = arith.constant 0 : index
    %17 = vector.load %arg2[%16, %c0_9, %c0_10] : memref<2x256x4xf32, #tpu.memory_space<vmem>>, vector<1x256x4xf32>
    %18 = vector.shape_cast %17 : vector<1x256x4xf32> to vector<256x4xf32>
    %19 = arith.truncf %18 : vector<256x4xf32> to vector<256x4xbf16>
    %cst_11 = arith.constant dense<0.000000e+00> : vector<256x128xf32>
    %20 = tpu.matmul %19, %0, %cst_11 {dimension_numbers = #tpu.dot_dimension_numbers<[1], [0], [0], [1], [0, 0, 1, 1], [], []>} : vector<256x4xbf16>, vector<4x128xbf16>, vector<256x128xf32> -> vector<256x128xf32>
    %cst_12 = arith.constant 0.000000e+00 : f32
    %21 = vector.broadcast %cst_12 : f32 to vector<256x128xf32>
    %22 = arith.maximumf %20, %21 : vector<256x128xf32>
    %cst_13 = arith.constant dense<0.000000e+00> : vector<128xf32>
    %23 = vector.multi_reduction <add>, %22, %cst_13 [0] : vector<256x128xf32> to vector<128xf32>
    %24 = vector.shape_cast %23 : vector<128xf32> to vector<1x128xf32>
    %25 = arith.mulf %24, %1 : vector<1x128xf32>
    %26 = arith.addf %25, %2 : vector<1x128xf32>
    %27 = arith.index_cast %c1_i32 : i32 to index
    %c0_14 = arith.constant 0 : index
    %28 = vector.load %arg5[%27, %c0_14] : memref<2x128xf32, #tpu.memory_space<vmem>>, vector<1x128xf32>
    tpu.vector_store %arg5[%27, %c0_14], %26 {strides = array<i32>} : memref<2x128xf32, #tpu.memory_space<vmem>>, vector<1x128xf32>,
    %c2_i32 = arith.constant 2 : i32
    return
  }
  func.func @transform_0(%arg0: i32, %arg1: i32) -> (i32, i32, i32) {
    %c0_i32 = arith.constant 0 : i32
    %c0_i32_0 = arith.constant 0 : i32
    %c0_i32_1 = arith.constant 0 : i32
    return %arg0, %c0_i32, %c0_i32_0 : i32, i32, i32
  }
  func.func @transform_1(%arg0: i32, %arg1: i32) -> (i32, i32) {
    %c0_i32 = arith.constant 0 : i32
    %c0_i32_0 = arith.constant 0 : i32
    return %c0_i32, %arg1 : i32, i32
  }
  func.func @transform_2(%arg0: i32, %arg1: i32) -> (i32, i32) {
    %c0_i32 = arith.constant 0 : i32
    %c0_i32_0 = arith.constant 0 : i32
    return %c0_i32, %arg1 : i32, i32
  }
  func.func @transform_3(%arg0: i32, %arg1: i32) -> (i32, i32) {
    %c0_i32 = arith.constant 0 : i32
    return %arg0, %arg1 : i32, i32
  }
}

</mosaic_0001>

<llo_original>
// kernel: tpu_custom_call.1
$region0: #{tpu_custom_call.1}
  #allocation0 [shape = 'u32[]', space=smem, size = 0x4, offset = 0x4, fixed_abs, tag = 'smem constant byte address 0x4 - core index']
  #allocation1 [shape = 'u32[144,128]{1,0:T(1,128)}', space=vmem, size = 0x12000, scoped, tag = 'internal scratch']
  %s0 = inlined_call_operand.vmem [shape: f32[2,256,4], index: 0, kind: input, shape index: {}]
  %s1 = inlined_call_operand.vmem [shape: bf16[4,128], index: 1, kind: input, shape index: {}]
  %s2 = inlined_call_operand.vmem [shape: f32[2,128], index: 2, kind: input, shape index: {}]
  %s3 = inlined_call_operand.hbm [shape: f32[2,128], index: 3, kind: output, shape index: {}]
  %s4 = sld [smem:[#allocation0]]
  $region22: #{tpu_custom_call.1} parent=0
    _
  %s6 = ssub.s32 1, %s4
  %s7 = scalar_select 0, %s6, %s4
  $region1: #{tpu_custom_call.1} parent=0
    #allocation2 [shape = 'u8[1024]{0}', space=vmem, size = 0x400, scoped, tag = 'output window, operand 0, single buffered']
    #allocation3 [shape = 's32[1]{0}', space=sflag, size = 0x4, scoped, tag = 'scoped memory for tpu_custom_call.1']
    %8 = vsyncpa [#allocation3], 0
    // Predicated region
    $region2: #{tpu_custom_call.1} parent=1 // pred_check
      _
    $region3: #{tpu_custom_call.1} parent=1 // pred_check_branch
      %10 = sbr.rel (0) target = $region5
    $region4: #{tpu_custom_call.1} parent=1 // pred_region
      _
    $region5: #{tpu_custom_call.1} parent=1 // pred_fallthru
      _
    // Predicated region
    $region6: #{tpu_custom_call.1} parent=1 // pred_check
      _
    $region7: #{tpu_custom_call.1} parent=1 // pred_check_branch
      %12 = sbr.rel (0) target = $region9
    $region8: #{tpu_custom_call.1} parent=1 // pred_region
      _
    $region9: #{tpu_custom_call.1} parent=1 // pred_fallthru
      _
    // Predicated region
    $region10: #{tpu_custom_call.1} parent=1 // pred_check
      _
    $region11: #{tpu_custom_call.1} parent=1 // pred_check_branch
      %14 = sbr.rel (0) target = $region13
    $region12: #{tpu_custom_call.1} parent=1 // pred_region
      _
    $region13: #{tpu_custom_call.1} parent=1 // pred_fallthru
      _
    %v16 = vld [vmem:[%s1] sm:$0x3]
    %v17 = vld [vmem:[%s2] sm:$0x1]
    %v18 = vld [vmem:[%s2 + $0x1] sm:$0x1]
    %v19 = vld [vmem:[%s0] sm:$0xff]
    %v20 = vld [vmem:[%s0 + $0x8] sm:$0xff]
    %v21 = vld [vmem:[%s0 + $0x10] sm:$0xff]
    %v22 = vld [vmem:[%s0 + $0x18] sm:$0xff]
    %v23 = vld [vmem:[%s0 + $0x20] sm:$0xff]
    %v24 = vld [vmem:[%s0 + $0x28] sm:$0xff]
    %v25 = vld [vmem:[%s0 + $0x30] sm:$0xff]
    %v26 = vld [vmem:[%s0 + $0x38] sm:$0xff]
    %v27 = vld [vmem:[%s0 + $0x40] sm:$0xff]
    %v28 = vld [vmem:[%s0 + $0x48] sm:$0xff]
    %v29 = vld [vmem:[%s0 + $0x50] sm:$0xff]
    %v30 = vld [vmem:[%s0 + $0x58] sm:$0xff]
    %v31 = vld [vmem:[%s0 + $0x60] sm:$0xff]
    %v32 = vld [vmem:[%s0 + $0x68] sm:$0xff]
    %v33 = vld [vmem:[%s0 + $0x70] sm:$0xff]
    %v34 = vld [vmem:[%s0 + $0x78] sm:$0xff]
    %v35 = vld [vmem:[%s0 + $0x80] sm:$0xff]
    %v36 = vld [vmem:[%s0 + $0x88] sm:$0xff]
    %v37 = vld [vmem:[%s0 + $0x90] sm:$0xff]
    %v38 = vld [vmem:[%s0 + $0x98] sm:$0xff]
    %v39 = vld [vmem:[%s0 + $0xa0] sm:$0xff]
    %v40 = vld [vmem:[%s0 + $0xa8] sm:$0xff]
    %v41 = vld [vmem:[%s0 + $0xb0] sm:$0xff]
    %v42 = vld [vmem:[%s0 + $0xb8] sm:$0xff]
    %v43 = vld [vmem:[%s0 + $0xc0] sm:$0xff]
    %v44 = vld [vmem:[%s0 + $0xc8] sm:$0xff]
    %v45 = vld [vmem:[%s0 + $0xd0] sm:$0xff]
    %v46 = vld [vmem:[%s0 + $0xd8] sm:$0xff]
    %v47 = vld [vmem:[%s0 + $0xe0] sm:$0xff]
    %v48 = vld [vmem:[%s0 + $0xe8] sm:$0xff]
    %v49 = vld [vmem:[%s0 + $0xf0] sm:$0xff]
    %v50 = vld [vmem:[%s0 + $0xf8] sm:$0xff]
    %v51 = vpack.c.bf16 %v20, %v19
    %v52 = vpack.c.bf16 %v22, %v21
    %v53 = vpack.c.bf16 %v24, %v23
    %v54 = vpack.c.bf16 %v26, %v25
    %v55 = vpack.c.bf16 %v28, %v27
    %v56 = vpack.c.bf16 %v30, %v29
    %v57 = vpack.c.bf16 %v32, %v31
    %v58 = vpack.c.bf16 %v34, %v33
    %v59 = vpack.c.bf16 %v36, %v35
    %v60 = vpack.c.bf16 %v38, %v37
    %v61 = vpack.c.bf16 %v40, %v39
    %v62 = vpack.c.bf16 %v42, %v41
    %v63 = vpack.c.bf16 %v44, %v43
    %v64 = vpack.c.bf16 %v46, %v45
    %v65 = vpack.c.bf16 %v48, %v47
    %v66 = vpack.c.bf16 %v50, %v49
    %vm67 = vcmask 31744
    %v69 = vsel %vm67, %v51, 0
    %v72 = vsel %vm67, %v52, 0
    %v75 = vsel %vm67, %v53, 0
    %v78 = vsel %vm67, %v54, 0
    %v81 = vsel %vm67, %v55, 0
    %v84 = vsel %vm67, %v56, 0
    %v87 = vsel %vm67, %v57, 0
    %v90 = vsel %vm67, %v58, 0
    %v93 = vsel %vm67, %v59, 0
    %v96 = vsel %vm67, %v60, 0
    %v99 = vsel %vm67, %v61, 0
    %v102 = vsel %vm67, %v62, 0
    %v105 = vsel %vm67, %v63, 0
    %v108 = vsel %vm67, %v64, 0
    %v111 = vsel %vm67, %v65, 0
    %v114 = vsel %vm67, %v66, 0
    %vm116 = vcmask 1041408
    %v118 = vsel %vm116, %v16, 0
    %120 = vmatprep.subr.bf16.mxu0 0
    %121 = vmatpush1.bf16.msra.mxu0 %v118
    %122 = vmatprep.subr.bf16.mxu0 0
    %123 = vmatpush1.bf16.msra.mxu0 0
    %124 = vmatprep.subr.bf16.mxu0 0
    %125 = vmatpush1.bf16.msra.mxu0 0
    %126 = vmatprep.subr.bf16.mxu0 0
    %127 = vmatpush1.bf16.msra.mxu0 0
    %128 = vmatprep.subr.bf16.mxu0 0
    %129 = vmatpush1.bf16.msra.mxu0 0
    %130 = vmatprep.subr.bf16.mxu0 0
    %131 = vmatpush1.bf16.msra.mxu0 0
    %132 = vmatprep.subr.bf16.mxu0 0
    %133 = vmatpush1.bf16.msra.mxu0 0
    %134 = vmatprep.subr.bf16.mxu0 0
    %135 = vmatpush1.bf16.msra.mxu0 0
    %136 = vmatprep.subr.bf16.mxu0 0
    %137 = vmatpush1.bf16.msra.mxu0 0
    %138 = vmatprep.subr.bf16.mxu0 0
    %139 = vmatpush1.bf16.msra.mxu0 0
    %140 = vmatprep.subr.bf16.mxu0 0
    %141 = vmatpush1.bf16.msra.mxu0 0
    %142 = vmatprep.subr.bf16.mxu0 0
    %143 = vmatpush1.bf16.msra.mxu0 0
    %144 = vmatprep.subr.bf16.mxu0 0
    %145 = vmatpush1.bf16.msra.mxu0 0
    %146 = vmatprep.subr.bf16.mxu0 0
    %147 = vmatpush1.bf16.msra.mxu0 0
    %148 = vmatprep.subr.bf16.mxu0 0
    %149 = vmatpush1.bf16.msra.mxu0 0
    %150 = vmatprep.subr.bf16.mxu0 0
    %151 = vmatpush1.bf16.msra.mxu0 0
    %152 = vmatprep.mubr.bf16.mxu0 0
    %153 = vmatmul.mubr.bf16.gmra.mrb[0].mxu0 %v69
    %v154 = vpop.f32.mrb[0].mxu0
    %v155 = vadd.f32 0.0, %v154
    %v156 = vpop.f32.mrb[0].mxu0
    %v157 = vpop.f32.mrb[0].mxu0
    %v158 = vadd.f32 0.0, %v157
    %v159 = vpop.f32.mrb[0].mxu0
    %160 = vmatprep.mubr.bf16.mxu0 0
    %161 = vmatmul.mubr.bf16.gmra.mrb[0].mxu0 %v72
    %v162 = vpop.f32.mrb[0].mxu0
    %v163 = vadd.f32 0.0, %v162
    %v164 = vpop.f32.mrb[0].mxu0
    %v165 = vpop.f32.mrb[0].mxu0
    %v166 = vadd.f32 0.0, %v165
    %v167 = vpop.f32.mrb[0].mxu0
    %168 = vmatprep.mubr.bf16.mxu0 0
    %169 = vmatmul.mubr.bf16.gmra.mrb[0].mxu0 %v75
    %v170 = vpop.f32.mrb[0].mxu0
    %v171 = vadd.f32 0.0, %v170
    %v172 = vpop.f32.mrb[0].mxu0
    %v173 = vpop.f32.mrb[0].mxu0
    %v174 = vadd.f32 0.0, %v173
    %v175 = vpop.f32.mrb[0].mxu0
    %176 = vmatprep.mubr.bf16.mxu0 0
    %177 = vmatmul.mubr.bf16.gmra.mrb[0].mxu0 %v78
    %v178 = vpop.f32.mrb[0].mxu0
    %v179 = vadd.f32 0.0, %v178
    %v180 = vpop.f32.mrb[0].mxu0
    %v181 = vpop.f32.mrb[0].mxu0
    %v182 = vadd.f32 0.0, %v181
    %v183 = vpop.f32.mrb[0].mxu0
    %184 = vmatprep.mubr.bf16.mxu0 0
    %185 = vmatmul.mubr.bf16.gmra.mrb[0].mxu0 %v81
    %v186 = vpop.f32.mrb[0].mxu0
    %v187 = vadd.f32 0.0, %v186
    %v188 = vpop.f32.mrb[0].mxu0
    %v189 = vpop.f32.mrb[0].mxu0
    %v190 = vadd.f32 0.0, %v189
    %v191 = vpop.f32.mrb[0].mxu0
    %192 = vmatprep.mubr.bf16.mxu0 0
    %193 = vmatmul.mubr.bf16.gmra.mrb[0].mxu0 %v84
    %v194 = vpop.f32.mrb[0].mxu0
    %v195 = vadd.f32 0.0, %v194
    %v196 = vpop.f32.mrb[0].mxu0
    %v197 = vpop.f32.mrb[0].mxu0
    %v198 = vadd.f32 0.0, %v197
    %v199 = vpop.f32.mrb[0].mxu0
    %200 = vmatprep.mubr.bf16.mxu0 0
    %201 = vmatmul.mubr.bf16.gmra.mrb[0].mxu0 %v87
    %v202 = vpop.f32.mrb[0].mxu0
    %v203 = vadd.f32 0.0, %v202
    %v204 = vpop.f32.mrb[0].mxu0
    %v205 = vpop.f32.mrb[0].mxu0
    %v206 = vadd.f32 0.0, %v205
    %v207 = vpop.f32.mrb[0].mxu0
    %208 = vmatprep.mubr.bf16.mxu0 0
    %209 = vmatmul.mubr.bf16.gmra.mrb[0].mxu0 %v90
    %v210 = vpop.f32.mrb[0].mxu0
    %v211 = vadd.f32 0.0, %v210
    %v212 = vpop.f32.mrb[0].mxu0
    %v213 = vpop.f32.mrb[0].mxu0
    %v214 = vadd.f32 0.0, %v213
    %v215 = vpop.f32.mrb[0].mxu0
    %216 = vmatprep.mubr.bf16.mxu0 0
    %217 = vmatmul.mubr.bf16.gmra.mrb[0].mxu0 %v93
    %v218 = vpop.f32.mrb[0].mxu0
    %v219 = vadd.f32 0.0, %v218
    %v220 = vpop.f32.mrb[0].mxu0
    %v221 = vpop.f32.mrb[0].mxu0
    %v222 = vadd.f32 0.0, %v221
    %v223 = vpop.f32.mrb[0].mxu0
    %224 = vmatprep.mubr.bf16.mxu0 0
    %225 = vmatmul.mubr.bf16.gmra.mrb[0].mxu0 %v96
    %v226 = vpop.f32.mrb[0].mxu0
    %v227 = vadd.f32 0.0, %v226
    %v228 = vpop.f32.mrb[0].mxu0
    %v229 = vpop.f32.mrb[0].mxu0
    %v230 = vadd.f32 0.0, %v229
    %v231 = vpop.f32.mrb[0].mxu0
    %232 = vmatprep.mubr.bf16.mxu0 0
    %233 = vmatmul.mubr.bf16.gmra.mrb[0].mxu0 %v99
    %v234 = vpop.f32.mrb[0].mxu0
    %v235 = vadd.f32 0.0, %v234
    %v236 = vpop.f32.mrb[0].mxu0
    %v237 = vpop.f32.mrb[0].mxu0
    %v238 = vadd.f32 0.0, %v237
    %v239 = vpop.f32.mrb[0].mxu0
    %240 = vmatprep.mubr.bf16.mxu0 0
    %241 = vmatmul.mubr.bf16.gmra.mrb[0].mxu0 %v102
    %v242 = vpop.f32.mrb[0].mxu0
    %v243 = vadd.f32 0.0, %v242
    %v244 = vpop.f32.mrb[0].mxu0
    %v245 = vpop.f32.mrb[0].mxu0
    %v246 = vadd.f32 0.0, %v245
    %v247 = vpop.f32.mrb[0].mxu0
    %248 = vmatprep.mubr.bf16.mxu0 0
    %249 = vmatmul.mubr.bf16.gmra.mrb[0].mxu0 %v105
    %v250 = vpop.f32.mrb[0].mxu0
    %v251 = vadd.f32 0.0, %v250
    %v252 = vpop.f32.mrb[0].mxu0
    %v253 = vpop.f32.mrb[0].mxu0
    %v254 = vadd.f32 0.0, %v253
    %v255 = vpop.f32.mrb[0].mxu0
    %256 = vmatprep.mubr.bf16.mxu0 0
    %257 = vmatmul.mubr.bf16.gmra.mrb[0].mxu0 %v108
    %v258 = vpop.f32.mrb[0].mxu0
    %v259 = vadd.f32 0.0, %v258
    %v260 = vpop.f32.mrb[0].mxu0
    %v261 = vpop.f32.mrb[0].mxu0
    %v262 = vadd.f32 0.0, %v261
    %v263 = vpop.f32.mrb[0].mxu0
    %264 = vmatprep.mubr.bf16.mxu0 0
    %265 = vmatmul.mubr.bf16.gmra.mrb[0].mxu0 %v111
    %v266 = vpop.f32.mrb[0].mxu0
    %v267 = vadd.f32 0.0, %v266
    %v268 = vpop.f32.mrb[0].mxu0
    %v269 = vpop.f32.mrb[0].mxu0
    %v270 = vadd.f32 0.0, %v269
    %v271 = vpop.f32.mrb[0].mxu0
    %272 = vmatprep.mubr.bf16.mxu0 0
    %273 = vmatmul.mubr.bf16.gmra.mrb[0].mxu0 %v114
    %v274 = vpop.f32.mrb[0].mxu0
    %v275 = vadd.f32 0.0, %v274
    %v276 = vpop.f32.mrb[0].mxu0
    %v277 = vpop.f32.mrb[0].mxu0
    %v278 = vadd.f32 0.0, %v277
    %v279 = vpop.f32.mrb[0].mxu0
    %280 = vdwg.mxu0
    %v281 = vmax.f32 %v155, 0.0
    %v282 = vmax.f32 %v158, 0.0
    %v283 = vmax.f32 %v163, 0.0
    %v284 = vmax.f32 %v166, 0.0
    %v285 = vmax.f32 %v171, 0.0
    %v286 = vmax.f32 %v174, 0.0
    %v287 = vmax.f32 %v179, 0.0
    %v288 = vmax.f32 %v182, 0.0
    %v289 = vmax.f32 %v187, 0.0
    %v290 = vmax.f32 %v190, 0.0
    %v291 = vmax.f32 %v195, 0.0
    %v292 = vmax.f32 %v198, 0.0
    %v293 = vmax.f32 %v203, 0.0
    %v294 = vmax.f32 %v206, 0.0
    %v295 = vmax.f32 %v211, 0.0
    %v296 = vmax.f32 %v214, 0.0
    %v297 = vmax.f32 %v219, 0.0
    %v298 = vmax.f32 %v222, 0.0
    %v299 = vmax.f32 %v227, 0.0
    %v300 = vmax.f32 %v230, 0.0
    %v301 = vmax.f32 %v235, 0.0
    %v302 = vmax.f32 %v238, 0.0
    %v303 = vmax.f32 %v243, 0.0
    %v304 = vmax.f32 %v246, 0.0
    %v305 = vmax.f32 %v251, 0.0
    %v306 = vmax.f32 %v254, 0.0
    %v307 = vmax.f32 %v259, 0.0
    %v308 = vmax.f32 %v262, 0.0
    %v309 = vmax.f32 %v267, 0.0
    %v310 = vmax.f32 %v270, 0.0
    %v311 = vmax.f32 %v275, 0.0
    %v312 = vmax.f32 %v278, 0.0
    %v313 = vadd.f32 %v281, %v282
    %v314 = vadd.f32 %v313, %v283
    %v315 = vadd.f32 %v314, %v284
    %v316 = vadd.f32 %v315, %v285
    %v317 = vadd.f32 %v316, %v286
    %v318 = vadd.f32 %v317, %v287
    %v319 = vadd.f32 %v318, %v288
    %v320 = vadd.f32 %v319, %v289
    %v321 = vadd.f32 %v320, %v290
    %v322 = vadd.f32 %v321, %v291
    %v323 = vadd.f32 %v322, %v292
    %v324 = vadd.f32 %v323, %v293
    %v325 = vadd.f32 %v324, %v294
    %v326 = vadd.f32 %v325, %v295
    %v327 = vadd.f32 %v326, %v296
    %v328 = vadd.f32 %v327, %v297
    %v329 = vadd.f32 %v328, %v298
    %v330 = vadd.f32 %v329, %v299
    %v331 = vadd.f32 %v330, %v300
    %v332 = vadd.f32 %v331, %v301
    %v333 = vadd.f32 %v332, %v302
    %v334 = vadd.f32 %v333, %v303
    %v335 = vadd.f32 %v334, %v304
    %v336 = vadd.f32 %v335, %v305
    %v337 = vadd.f32 %v336, %v306
    %v338 = vadd.f32 %v337, %v307
    %v339 = vadd.f32 %v338, %v308
    %v340 = vadd.f32 %v339, %v309
    %v341 = vadd.f32 %v340, %v310
    %v342 = vadd.f32 %v341, %v311
    %v343 = vadd.f32 %v342, %v312
    %v344 = vrot.slane %v343, 4
    %v345 = vadd.f32 %v343, %v344
    %v346 = vrot.slane %v345, 2
    %v347 = vadd.f32 %v345, %v346
    %v348 = vrot.slane %v347, 1
    %v349 = vadd.f32 %v347, %v348
    %v350 = vmul.f32 %v349, %v17
    %v351 = vadd.f32 %v350, %v18
    %352 = vst [vmem:[#allocation2] sm:$0x1] %v351
    %s353 = scalar_lea.vmem %s0, 256
    %v354 = vld [vmem:[%s353] sm:$0xff]
    %v355 = vld [vmem:[%s353 + $0x8] sm:$0xff]
    %v356 = vld [vmem:[%s353 + $0x10] sm:$0xff]
    %v357 = vld [vmem:[%s353 + $0x18] sm:$0xff]
    %v358 = vld [vmem:[%s353 + $0x20] sm:$0xff]
    %v359 = vld [vmem:[%s353 + $0x28] sm:$0xff]
    %v360 = vld [vmem:[%s353 + $0x30] sm:$0xff]
    %v361 = vld [vmem:[%s353 + $0x38] sm:$0xff]
    %v362 = vld [vmem:[%s353 + $0x40] sm:$0xff]
    %v363 = vld [vmem:[%s353 + $0x48] sm:$0xff]
    %v364 = vld [vmem:[%s353 + $0x50] sm:$0xff]
    %v365 = vld [vmem:[%s353 + $0x58] sm:$0xff]
    %v366 = vld [vmem:[%s353 + $0x60] sm:$0xff]
    %v367 = vld [vmem:[%s353 + $0x68] sm:$0xff]
    %v368 = vld [vmem:[%s353 + $0x70] sm:$0xff]
    %v369 = vld [vmem:[%s353 + $0x78] sm:$0xff]
    %v370 = vld [vmem:[%s353 + $0x80] sm:$0xff]
    %v371 = vld [vmem:[%s353 + $0x88] sm:$0xff]
    %v372 = vld [vmem:[%s353 + $0x90] sm:$0xff]
    %v373 = vld [vmem:[%s353 + $0x98] sm:$0xff]
    %v374 = vld [vmem:[%s353 + $0xa0] sm:$0xff]
    %v375 = vld [vmem:[%s353 + $0xa8] sm:$0xff]
    %v376 = vld [vmem:[%s353 + $0xb0] sm:$0xff]
    %v377 = vld [vmem:[%s353 + $0xb8] sm:$0xff]
    %v378 = vld [vmem:[%s353 + $0xc0] sm:$0xff]
    %v379 = vld [vmem:[%s353 + $0xc8] sm:$0xff]
    %v380 = vld [vmem:[%s353 + $0xd0] sm:$0xff]
    %v381 = vld [vmem:[%s353 + $0xd8] sm:$0xff]
    %v382 = vld [vmem:[%s353 + $0xe0] sm:$0xff]
    %v383 = vld [vmem:[%s353 + $0xe8] sm:$0xff]
    %v384 = vld [vmem:[%s353 + $0xf0] sm:$0xff]
    %v385 = vld [vmem:[%s353 + $0xf8] sm:$0xff]
    %v386 = vpack.c.bf16 %v355, %v354
    %v387 = vpack.c.bf16 %v357, %v356
    %v388 = vpack.c.bf16 %v359, %v358
    %v389 = vpack.c.bf16 %v361, %v360
    %v390 = vpack.c.bf16 %v363, %v362
    %v391 = vpack.c.bf16 %v365, %v364
    %v392 = vpack.c.bf16 %v367, %v366
    %v393 = vpack.c.bf16 %v369, %v368
    %v394 = vpack.c.bf16 %v371, %v370
    %v395 = vpack.c.bf16 %v373, %v372
    %v396 = vpack.c.bf16 %v375, %v374
    %v397 = vpack.c.bf16 %v377, %v376
    %v398 = vpack.c.bf16 %v379, %v378
    %v399 = vpack.c.bf16 %v381, %v380
    %v400 = vpack.c.bf16 %v383, %v382
    %v401 = vpack.c.bf16 %v385, %v384
    %v403 = vsel %vm67, %v386, 0
    %v406 = vsel %vm67, %v387, 0
    %v409 = vsel %vm67, %v388, 0
    %v412 = vsel %vm67, %v389, 0
    %v415 = vsel %vm67, %v390, 0
    %v418 = vsel %vm67, %v391, 0
    %v421 = vsel %vm67, %v392, 0
    %v424 = vsel %vm67, %v393, 0
    %v427 = vsel %vm67, %v394, 0
    %v430 = vsel %vm67, %v395, 0
    %v433 = vsel %vm67, %v396, 0
    %v436 = vsel %vm67, %v397, 0
    %v439 = vsel %vm67, %v398, 0
    %v442 = vsel %vm67, %v399, 0
    %v445 = vsel %vm67, %v400, 0
    %v448 = vsel %vm67, %v401, 0
    %450 = vmatprep.subr.bf16.mxu0 0
    %451 = vmatpush1.bf16.msra.mxu0 %v118
    %452 = vmatprep.subr.bf16.mxu0 0
    %453 = vmatpush1.bf16.msra.mxu0 0
    %454 = vmatprep.subr.bf16.mxu0 0
    %455 = vmatpush1.bf16.msra.mxu0 0
    %456 = vmatprep.subr.bf16.mxu0 0
    %457 = vmatpush1.bf16.msra.mxu0 0
    %458 = vmatprep.subr.bf16.mxu0 0
    %459 = vmatpush1.bf16.msra.mxu0 0
    %460 = vmatprep.subr.bf16.mxu0 0
    %461 = vmatpush1.bf16.msra.mxu0 0
    %462 = vmatprep.subr.bf16.mxu0 0
    %463 = vmatpush1.bf16.msra.mxu0 0
    %464 = vmatprep.subr.bf16.mxu0 0
    %465 = vmatpush1.bf16.msra.mxu0 0
    %466 = vmatprep.subr.bf16.mxu0 0
    %467 = vmatpush1.bf16.msra.mxu0 0
    %468 = vmatprep.subr.bf16.mxu0 0
    %469 = vmatpush1.bf16.msra.mxu0 0
    %470 = vmatprep.subr.bf16.mxu0 0
    %471 = vmatpush1.bf16.msra.mxu0 0
    %472 = vmatprep.subr.bf16.mxu0 0
    %473 = vmatpush1.bf16.msra.mxu0 0
    %474 = vmatprep.subr.bf16.mxu0 0
    %475 = vmatpush1.bf16.msra.mxu0 0
    %476 = vmatprep.subr.bf16.mxu0 0
    %477 = vmatpush1.bf16.msra.mxu0 0
    %478 = vmatprep.subr.bf16.mxu0 0
    %479 = vmatpush1.bf16.msra.mxu0 0
    %480 = vmatprep.subr.bf16.mxu0 0
    %481 = vmatpush1.bf16.msra.mxu0 0
    %482 = vmatprep.mubr.bf16.mxu0 0
    %483 = vmatmul.mubr.bf16.gmra.mrb[0].mxu0 %v403
    %v484 = vpop.f32.mrb[0].mxu0
    %v485 = vadd.f32 0.0, %v484
    %v486 = vpop.f32.mrb[0].mxu0
    %v487 = vpop.f32.mrb[0].mxu0
    %v488 = vadd.f32 0.0, %v487
    %v489 = vpop.f32.mrb[0].mxu0
    %490 = vmatprep.mubr.bf16.mxu0 0
    %491 = vmatmul.mubr.bf16.gmra.mrb[0].mxu0 %v406
    %v492 = vpop.f32.mrb[0].mxu0
    %v493 = vadd.f32 0.0, %v492
    %v494 = vpop.f32.mrb[0].mxu0
    %v495 = vpop.f32.mrb[0].mxu0
    %v496 = vadd.f32 0.0, %v495
    %v497 = vpop.f32.mrb[0].mxu0
    %498 = vmatprep.mubr.bf16.mxu0 0
    %499 = vmatmul.mubr.bf16.gmra.mrb[0].mxu0 %v409
    %v500 = vpop.f32.mrb[0].mxu0
    %v501 = vadd.f32 0.0, %v500
    %v502 = vpop.f32.mrb[0].mxu0
    %v503 = vpop.f32.mrb[0].mxu0
    %v504 = vadd.f32 0.0, %v503
    %v505 = vpop.f32.mrb[0].mxu0
    %506 = vmatprep.mubr.bf16.mxu0 0
    %507 = vmatmul.mubr.bf16.gmra.mrb[0].mxu0 %v412
    %v508 = vpop.f32.mrb[0].mxu0
    %v509 = vadd.f32 0.0, %v508
    %v510 = vpop.f32.mrb[0].mxu0
    %v511 = vpop.f32.mrb[0].mxu0
    %v512 = vadd.f32 0.0, %v511
    %v513 = vpop.f32.mrb[0].mxu0
    %514 = vmatprep.mubr.bf16.mxu0 0
    %515 = vmatmul.mubr.bf16.gmra.mrb[0].mxu0 %v415
    %v516 = vpop.f32.mrb[0].mxu0
    %v517 = vadd.f32 0.0, %v516
    %v518 = vpop.f32.mrb[0].mxu0
    %v519 = vpop.f32.mrb[0].mxu0
    %v520 = vadd.f32 0.0, %v519
    %v521 = vpop.f32.mrb[0].mxu0
    %522 = vmatprep.mubr.bf16.mxu0 0
    %523 = vmatmul.mubr.bf16.gmra.mrb[0].mxu0 %v418
    %v524 = vpop.f32.mrb[0].mxu0
    %v525 = vadd.f32 0.0, %v524
    %v526 = vpop.f32.mrb[0].mxu0
    %v527 = vpop.f32.mrb[0].mxu0
    %v528 = vadd.f32 0.0, %v527
    %v529 = vpop.f32.mrb[0].mxu0
    %530 = vmatprep.mubr.bf16.mxu0 0
    %531 = vmatmul.mubr.bf16.gmra.mrb[0].mxu0 %v421
    %v532 = vpop.f32.mrb[0].mxu0
    %v533 = vadd.f32 0.0, %v532
    %v534 = vpop.f32.mrb[0].mxu0
    %v535 = vpop.f32.mrb[0].mxu0
    %v536 = vadd.f32 0.0, %v535
    %v537 = vpop.f32.mrb[0].mxu0
    %538 = vmatprep.mubr.bf16.mxu0 0
    %539 = vmatmul.mubr.bf16.gmra.mrb[0].mxu0 %v424
    %v540 = vpop.f32.mrb[0].mxu0
    %v541 = vadd.f32 0.0, %v540
    %v542 = vpop.f32.mrb[0].mxu0
    %v543 = vpop.f32.mrb[0].mxu0
    %v544 = vadd.f32 0.0, %v543
    %v545 = vpop.f32.mrb[0].mxu0
    %546 = vmatprep.mubr.bf16.mxu0 0
    %547 = vmatmul.mubr.bf16.gmra.mrb[0].mxu0 %v427
    %v548 = vpop.f32.mrb[0].mxu0
    %v549 = vadd.f32 0.0, %v548
    %v550 = vpop.f32.mrb[0].mxu0
    %v551 = vpop.f32.mrb[0].mxu0
    %v552 = vadd.f32 0.0, %v551
    %v553 = vpop.f32.mrb[0].mxu0
    %554 = vmatprep.mubr.bf16.mxu0 0
    %555 = vmatmul.mubr.bf16.gmra.mrb[0].mxu0 %v430
    %v556 = vpop.f32.mrb[0].mxu0
    %v557 = vadd.f32 0.0, %v556
    %v558 = vpop.f32.mrb[0].mxu0
    %v559 = vpop.f32.mrb[0].mxu0
    %v560 = vadd.f32 0.0, %v559
    %v561 = vpop.f32.mrb[0].mxu0
    %562 = vmatprep.mubr.bf16.mxu0 0
    %563 = vmatmul.mubr.bf16.gmra.mrb[0].mxu0 %v433
    %v564 = vpop.f32.mrb[0].mxu0
    %v565 = vadd.f32 0.0, %v564
    %v566 = vpop.f32.mrb[0].mxu0
    %v567 = vpop.f32.mrb[0].mxu0
    %v568 = vadd.f32 0.0, %v567
    %v569 = vpop.f32.mrb[0].mxu0
    %570 = vmatprep.mubr.bf16.mxu0 0
    %571 = vmatmul.mubr.bf16.gmra.mrb[0].mxu0 %v436
    %v572 = vpop.f32.mrb[0].mxu0
    %v573 = vadd.f32 0.0, %v572
    %v574 = vpop.f32.mrb[0].mxu0
    %v575 = vpop.f32.mrb[0].mxu0
    %v576 = vadd.f32 0.0, %v575
    %v577 = vpop.f32.mrb[0].mxu0
    %578 = vmatprep.mubr.bf16.mxu0 0
    %579 = vmatmul.mubr.bf16.gmra.mrb[0].mxu0 %v439
    %v580 = vpop.f32.mrb[0].mxu0
    %v581 = vadd.f32 0.0, %v580
    %v582 = vpop.f32.mrb[0].mxu0
    %v583 = vpop.f32.mrb[0].mxu0
    %v584 = vadd.f32 0.0, %v583
    %v585 = vpop.f32.mrb[0].mxu0
    %586 = vmatprep.mubr.bf16.mxu0 0
    %587 = vmatmul.mubr.bf16.gmra.mrb[0].mxu0 %v442
    %v588 = vpop.f32.mrb[0].mxu0
    %v589 = vadd.f32 0.0, %v588
    %v590 = vpop.f32.mrb[0].mxu0
    %v591 = vpop.f32.mrb[0].mxu0
    %v592 = vadd.f32 0.0, %v591
    %v593 = vpop.f32.mrb[0].mxu0
    %594 = vmatprep.mubr.bf16.mxu0 0
    %595 = vmatmul.mubr.bf16.gmra.mrb[0].mxu0 %v445
    %v596 = vpop.f32.mrb[0].mxu0
    %v597 = vadd.f32 0.0, %v596
    %v598 = vpop.f32.mrb[0].mxu0
    %v599 = vpop.f32.mrb[0].mxu0
    %v600 = vadd.f32 0.0, %v599
    %v601 = vpop.f32.mrb[0].mxu0
    %602 = vmatprep.mubr.bf16.mxu0 0
    %603 = vmatmul.mubr.bf16.gmra.mrb[0].mxu0 %v448
    %v604 = vpop.f32.mrb[0].mxu0
    %v605 = vadd.f32 0.0, %v604
    %v606 = vpop.f32.mrb[0].mxu0
    %v607 = vpop.f32.mrb[0].mxu0
    %v608 = vadd.f32 0.0, %v607
    %v609 = vpop.f32.mrb[0].mxu0
    %610 = vdwg.mxu0
    %v611 = vmax.f32 %v485, 0.0
    %v612 = vmax.f32 %v488, 0.0
    %v613 = vmax.f32 %v493, 0.0
    %v614 = vmax.f32 %v496, 0.0
    %v615 = vmax.f32 %v501, 0.0
    %v616 = vmax.f32 %v504, 0.0
    %v617 = vmax.f32 %v509, 0.0
    %v618 = vmax.f32 %v512, 0.0
    %v619 = vmax.f32 %v517, 0.0
    %v620 = vmax.f32 %v520, 0.0
    %v621 = vmax.f32 %v525, 0.0
    %v622 = vmax.f32 %v528, 0.0
    %v623 = vmax.f32 %v533, 0.0
    %v624 = vmax.f32 %v536, 0.0
    %v625 = vmax.f32 %v541, 0.0
    %v626 = vmax.f32 %v544, 0.0
    %v627 = vmax.f32 %v549, 0.0
    %v628 = vmax.f32 %v552, 0.0
    %v629 = vmax.f32 %v557, 0.0
    %v630 = vmax.f32 %v560, 0.0
    %v631 = vmax.f32 %v565, 0.0
    %v632 = vmax.f32 %v568, 0.0
    %v633 = vmax.f32 %v573, 0.0
    %v634 = vmax.f32 %v576, 0.0
    %v635 = vmax.f32 %v581, 0.0
    %v636 = vmax.f32 %v584, 0.0
    %v637 = vmax.f32 %v589, 0.0
    %v638 = vmax.f32 %v592, 0.0
    %v639 = vmax.f32 %v597, 0.0
    %v640 = vmax.f32 %v600, 0.0
    %v641 = vmax.f32 %v605, 0.0
    %v642 = vmax.f32 %v608, 0.0
    %v643 = vadd.f32 %v611, %v612
    %v644 = vadd.f32 %v643, %v613
    %v645 = vadd.f32 %v644, %v614
    %v646 = vadd.f32 %v645, %v615
    %v647 = vadd.f32 %v646, %v616
    %v648 = vadd.f32 %v647, %v617
    %v649 = vadd.f32 %v648, %v618
    %v650 = vadd.f32 %v649, %v619
    %v651 = vadd.f32 %v650, %v620
    %v652 = vadd.f32 %v651, %v621
    %v653 = vadd.f32 %v652, %v622
    %v654 = vadd.f32 %v653, %v623
    %v655 = vadd.f32 %v654, %v624
    %v656 = vadd.f32 %v655, %v625
    %v657 = vadd.f32 %v656, %v626
    %v658 = vadd.f32 %v657, %v627
    %v659 = vadd.f32 %v658, %v628
    %v660 = vadd.f32 %v659, %v629
    %v661 = vadd.f32 %v660, %v630
    %v662 = vadd.f32 %v661, %v631
    %v663 = vadd.f32 %v662, %v632
    %v664 = vadd.f32 %v663, %v633
    %v665 = vadd.f32 %v664, %v634
    %v666 = vadd.f32 %v665, %v635
    %v667 = vadd.f32 %v666, %v636
    %v668 = vadd.f32 %v667, %v637
    %v669 = vadd.f32 %v668, %v638
    %v670 = vadd.f32 %v669, %v639
    %v671 = vadd.f32 %v670, %v640
    %v672 = vadd.f32 %v671, %v641
    %v673 = vadd.f32 %v672, %v642
    %v674 = vrot.slane %v673, 4
    %v675 = vadd.f32 %v673, %v674
    %v676 = vrot.slane %v675, 2
    %v677 = vadd.f32 %v675, %v676
    %v678 = vrot.slane %v677, 1
    %v679 = vadd.f32 %v677, %v678
    %v680 = vmul.f32 %v679, %v17
    %v681 = vadd.f32 %v680, %v18
    %682 = vst [vmem:[#allocation2 + $0x1] sm:$0x1] %v681
    // Predicated region
    $region14: #{tpu_custom_call.1} parent=1 // pred_check
      _
    $region15: #{tpu_custom_call.1} parent=1 // pred_check_branch
      %684 = sbr.rel (0) target = $region17
    $region16: #{tpu_custom_call.1} parent=1 // pred_region
      %s686 = ssub.s32 32, 32
      %687 = vsyncadd [#allocation3], %s686
      %s689 = sshll.u32 [#allocation2], 4
      %s690 = int_to_ptr.vmem [resolvable:$true] %s689
      %692 = dma.vmem_to_hbm [thread:$0]  %s690, 32, %s3, [#allocation3]
    $region17: #{tpu_custom_call.1} parent=1 // pred_fallthru
      _
    // Predicated region
    $region18: #{tpu_custom_call.1} parent=1 // pred_check
      _
    $region19: #{tpu_custom_call.1} parent=1 // pred_check_branch
      %694 = sbr.rel (0) target = $region21
    $region20: #{tpu_custom_call.1} parent=1 // pred_region
      %695 = dma.done [#allocation3], 32
    $region21: #{tpu_custom_call.1} parent=1 // pred_fallthru
      _
    %696 = vsyncpa [#allocation3], 1

</llo_original>
